<compile_context>
chip_gen: v5e
topology: v5e:2x2
jax: 0.10.0
libtpu: 0.0.40
codegen_flags: <defaults>
</compile_context>

<pallas_src>
import jax
import jax.numpy as jnp
from jax import lax
from jax.experimental import pallas as pl
from jax.experimental.pallas import tpu as pltpu


def _gelu(x):
    # tanh-approximate GELU: tanh goes to the EUP slot (co-issues with MXU /
    # VALU) instead of a ~15-op VPU erf polynomial.
    # TODO(synk): deviates slightly (~1e-3) from torch.nn.GELU()'s exact erf.
    c = 0.7978845608028654  # sqrt(2/pi)
    return 0.5 * x * (1.0 + jnp.tanh(c * (x + 0.044715 * x * x * x)))


def _pick_tile(n, cap, align):
    """Largest divisor of n that is a multiple of `align` and <= cap."""
    if n <= cap:
        return n
    for a in (align, 16, 8):
        t = cap - cap % a
        while t >= a:
            if n % t == 0:
                return t
            t -= a
    # Guarded fallback: no aligned divisor <= cap (prime-ish M). Returning n
    # keeps correctness; for SAM-style power-of-two spatial sizes this never
    # triggers.
    return n


def _vmem_limit(block_bytes):
    # actual double-buffered pipeline need + headroom for compiler scratch;
    # stays far below v7x's 64 MiB physical VMEM for the chosen tiles.
    return int(min(max(2 * block_bytes + (4 << 20), 8 << 20), 96 << 20))


# ----------------------------- Pallas kernels --------------------------------

def _conv1_ln_gelu_kernel(x_ref, w_ref, b_ref, g_ref, beta_ref, o_ref):
    # x:(1,TM,C) bf16   w:(C,4*C4) bf16   b:(1,4*C4) f32   g/beta:(1,C4) f32
    # o:(1,TM,4*C4) bf16.  Columns of w / o are (kh,kw)-major, channel-minor,
    # so every LayerNorm2d group is a contiguous C4-wide column block.
    c4 = g_ref.shape[-1]
    y = jnp.dot(x_ref[0], w_ref[...], preferred_element_type=jnp.float32)
    y = y + b_ref[...]
    gamma = g_ref[...]
    beta = beta_ref[...]
    parts = []
    for k in range(4):                       # static unroll over (kh, kw)
        blk = y[:, k * c4:(k + 1) * c4]
        u = jnp.mean(blk, axis=-1, keepdims=True)
        ex2 = jnp.mean(blk * blk, axis=-1, keepdims=True)
        var = ex2 - u * u                    # one-pass variance
        blk = (blk - u) * lax.rsqrt(var + 1e-6)
        parts.append(_gelu(blk * gamma + beta))
    o_ref[0] = jnp.concatenate(parts, axis=-1).astype(o_ref.dtype)


def _conv2_gelu_mask_kernel(x_ref, w_ref, b_ref, hyp_ref, m_ref):
    # x:(1,TM,C4) bf16  w:(C4,4*C8) bf16  b:(1,4*C8) f32
    # hyp:(1,4*Nt,4*C8) bf16 block-diagonal   m:(1,4*Nt,TM) f32 (lane-dense).
    # Fused: conv-transpose matmul -> GELU -> single block-diag mask matmul;
    # the upscaled embedding never leaves VMEM and the mask store is unmasked.
    y = jnp.dot(x_ref[0], w_ref[...], preferred_element_type=jnp.float32)
    y = _gelu(y + b_ref[...]).astype(jnp.bfloat16)
    m_ref[0] = lax.dot_general(
        hyp_ref[0], y,
        dimension_numbers=(((1,), (1,)), ((), ())),     # contract on 4*C8
        preferred_element_type=jnp.float32)             # -> (4*Nt, TM)


def _heads_kernel(tok_ref, hw1, hb1, hw2, hb2, hw3, hb3,
                  iou_x, iw1, ib1, iw2, ib2, iw3, ib3,
                  hyper_ref, iou_ref):
    # All hypernetwork MLPs (static unroll over mask tokens) + IoU head in one
    # untiled VMEM call; compute is tiny, this is purely launch/DMA economy.
    nt = tok_ref.shape[0]
    for t in range(nt):
        h = jnp.dot(tok_ref[t], hw1[t], preferred_element_type=jnp.float32) + hb1[t]
        h = jnp.maximum(h, 0.0).astype(jnp.bfloat16)
        h = jnp.dot(h, hw2[t], preferred_element_type=jnp.float32) + hb2[t]
        h = jnp.maximum(h, 0.0).astype(jnp.bfloat16)
        h = jnp.dot(h, hw3[t], preferred_element_type=jnp.float32) + hb3[t]
        hyper_ref[t] = h
    g = jnp.dot(iou_x[...], iw1[...], preferred_element_type=jnp.float32) + ib1[...]
    g = jnp.maximum(g, 0.0)
    g = jnp.dot(g, iw2[...], preferred_element_type=jnp.float32) + ib2[...]
    g = jnp.maximum(g, 0.0)
    g = jnp.dot(g, iw3[...], preferred_element_type=jnp.float32) + ib3[...]
    iou_ref[...] = g


# ----------------------------- pallas_call wrappers ---------------------------

def conv_transpose1_ln_gelu(src_bmc, weight, bias, gamma, beta):
    """ConvTranspose2d(C, C/4, k=2, s=2) -> LayerNorm2d -> GELU (fused).
    src_bmc: (B, M, C) channels-last flattened pixels.  weight: (C, C/4, 2, 2).
    Returns raw (B, M, 4*C4) bf16 with (kh,kw)-major / channel-minor columns
    (pixel shuffle deferred to the final mask transpose)."""
    B, M, C = src_bmc.shape
    C4 = weight.shape[1]
    TM = _pick_tile(M, cap=2048, align=16)
    x = src_bmc.astype(jnp.bfloat16)
    w_mat = jnp.transpose(weight, (0, 2, 3, 1)).reshape(C, 4 * C4).astype(jnp.bfloat16)
    b_vec = jnp.tile(bias, 4).reshape(1, 4 * C4).astype(jnp.float32)
    g = gamma.reshape(1, C4).astype(jnp.float32)
    bt = beta.reshape(1, C4).astype(jnp.float32)

    block_bytes = (TM * C * 2 + C * 4 * C4 * 2 + 4 * C4 * 4 + 2 * C4 * 4
                   + TM * 4 * C4 * 2)
    out = pl.pallas_call(
        _conv1_ln_gelu_kernel,
        out_shape=jax.ShapeDtypeStruct((B, M, 4 * C4), jnp.bfloat16),
        grid=(B, M // TM),
        in_specs=[
            pl.BlockSpec((1, TM, C), lambda b, m: (b, m, 0)),
            pl.BlockSpec((C, 4 * C4), lambda b, m: (0, 0)),
            pl.BlockSpec((1, 4 * C4), lambda b, m: (0, 0)),
            pl.BlockSpec((1, C4), lambda b, m: (0, 0)),
            pl.BlockSpec((1, C4), lambda b, m: (0, 0)),
        ],
        out_specs=pl.BlockSpec((1, TM, 4 * C4), lambda b, m: (b, m, 0)),
        compiler_params=pltpu.CompilerParams(
            dimension_semantics=("parallel", "parallel"),
            vmem_limit_bytes=_vmem_limit(block_bytes)),
        cost_estimate=pl.CostEstimate(
            flops=2 * B * M * C * 4 * C4,
            transcendentals=B * M * 4 * C4,
            bytes_accessed=B * M * C * 2 + C * 4 * C4 * 2 + B * M * 4 * C4 * 2),
    )(x, w_mat, b_vec, g, bt)
    return out


def conv_transpose2_gelu_mask(ups_raw, h, w, weight, bias, hyper_in):
    """ConvTranspose2d(C/4, C/8, k=2, s=2) -> GELU -> (hyper_in @ upscaled),
    fully fused; masks emitted lane-dense (pixels on the lane axis).
    ups_raw: (B, M, 4*C4) raw kernel-1 output (M = h*w low-res pixels).
    weight: (C/4, C/8, 2, 2).  hyper_in: (B, Nt, C/8).
    Returns masks (B, Nt, 4h, 4w) f32."""
    B, M, C4x4 = ups_raw.shape
    C4 = C4x4 // 4
    C8 = weight.shape[1]
    Nt = hyper_in.shape[1]
    M2 = 4 * M
    # free reshape (no transpose): rows r = (i*w + j)*4 + kh1*2 + kw1
    x = ups_raw.reshape(B, M2, C4)
    TM = _pick_tile(M2, cap=4096, align=128)
    w_mat = jnp.transpose(weight, (0, 2, 3, 1)).reshape(C4, 4 * C8).astype(jnp.bfloat16)
    b_vec = jnp.tile(bias, 4).reshape(1, 4 * C8).astype(jnp.float32)
    # block-diagonal (transposed) hyper matrix: row q = t*4 + k2,
    # col = k2*C8 + c, value = hyper_in[b, t, c]
    eye4 = jnp.eye(4, dtype=hyper_in.dtype)
    hyp_bdT = jnp.einsum("btc,kK->btkKc", hyper_in, eye4)
    hyp_bdT = hyp_bdT.reshape(B, 4 * Nt, 4 * C8).astype(jnp.bfloat16)

    block_bytes = (TM * C4 * 2 + C4 * 4 * C8 * 2 + 4 * C8 * 4
                   + 4 * Nt * 4 * C8 * 2 + 4 * Nt * TM * 4)
    out = pl.pallas_call(
        _conv2_gelu_mask_kernel,
        out_shape=jax.ShapeDtypeStruct((B, 4 * Nt, M2), jnp.float32),
        grid=(B, M2 // TM),
        in_specs=[
            pl.BlockSpec((1, TM, C4), lambda b, m: (b, m, 0)),
            pl.BlockSpec((C4, 4 * C8), lambda b, m: (0, 0)),
            pl.BlockSpec((1, 4 * C8), lambda b, m: (0, 0)),
            pl.BlockSpec((1, 4 * Nt, 4 * C8), lambda b, m: (b, 0, 0)),
        ],
        out_specs=pl.BlockSpec((1, 4 * Nt, TM), lambda b, m: (b, 0, m)),
        compiler_params=pltpu.CompilerParams(
            dimension_semantics=("parallel", "parallel"),
            vmem_limit_bytes=_vmem_limit(block_bytes)),
        cost_estimate=pl.CostEstimate(
            flops=2 * B * M2 * (C4 * 4 * C8 + 4 * C8 * 4 * Nt),
            transcendentals=B * M2 * 4 * C8,
            bytes_accessed=B * M2 * C4 * 2 + C4 * 4 * C8 * 2 + B * 4 * Nt * M2 * 4),
    )(x, w_mat, b_vec, hyp_bdT)
    # single final unshuffle: (b, t, kh2, kw2, i, j, kh1, kw1)
    out = out.reshape(B, Nt, 2, 2, h, w, 2, 2)
    out = out.transpose(0, 1, 4, 6, 2, 5, 7, 3)   # (b, t, i, kh1, kh2, j, kw1, kw2)
    return out.reshape(B, Nt, 4 * h, 4 * w)


def pallas_token_heads(mask_tokens_out, hyper_params, iou_token_out, iou_params):
    """All hypernetwork MLPs + IoU head in one untiled VMEM pallas_call."""
    B, Nt, C = mask_tokens_out.shape
    hw1, hb1, hw2, hb2, hw3, hb3 = hyper_params
    iw1, ib1, iw2, ib2, iw3, ib3 = iou_params
    C8 = hw3.shape[-1]
    Nm = iw3.shape[-1]
    tok = jnp.transpose(mask_tokens_out, (1, 0, 2)).astype(jnp.bfloat16)  # (Nt,B,C)
    vm = pl.BlockSpec(memory_space=pltpu.MemorySpace.VMEM)
    hyper, iou = pl.pallas_call(
        _heads_kernel,
        out_shape=(jax.ShapeDtypeStruct((Nt, B, C8), jnp.float32),
                   jax.ShapeDtypeStruct((B, Nm), jnp.float32)),
        in_specs=[vm] * 14,
        out_specs=(vm, vm),
    )(tok,
      hw1.astype(jnp.bfloat16), hb1, hw2.astype(jnp.bfloat16), hb2,
      hw3.astype(jnp.bfloat16), hb3,
      iou_token_out, iw1, ib1.reshape(1, -1), iw2, ib2.reshape(1, -1),
      iw3, ib3.reshape(1, -1))
    return jnp.transpose(hyper, (1, 0, 2)), iou           # (B,Nt,C8), (B,Nm)


# ----------------------------- module pieces ----------------------------------

def _expand_batch(x, n):
    # torch.repeat_interleave(x, n, dim=0); the usual batch-1 image embedding
    # becomes a free broadcast instead of an HBM copy.
    if x.shape[0] == 1:
        return jnp.broadcast_to(x, (n,) + x.shape[1:])
    return jnp.repeat(x, n, axis=0)


def simple_two_way_transformer(src, pos_src, tokens):
    # TODO(synk): the real `transformer` is an injected external nn.Module
    # (SAM TwoWayTransformer); here it is replaced by a deterministic,
    # parameter-free two-way cross-attention stand-in with identical I/O shapes.
    B, C, H, W = src.shape
    src_f = src.reshape(B, C, H * W).transpose(0, 2, 1)        # (B, HW, C)
    pos_f = pos_src.reshape(B, C, H * W).transpose(0, 2, 1)
    scale = 1.0 / jnp.sqrt(jnp.float32(C))
    k = src_f + pos_f
    attn_t2i = jax.nn.softmax(jnp.einsum("bnc,bmc->bnm", tokens, k) * scale, axis=-1)
    hs = tokens + jnp.einsum("bnm,bmc->bnc", attn_t2i, src_f)
    attn_i2t = jax.nn.softmax(jnp.einsum("bmc,bnc->bmn", k, hs) * scale, axis=-1)
    src_out = src_f + jnp.einsum("bmn,bnc->bmc", attn_i2t, hs)
    return hs, src_out                                         # (B,Ntok,C), (B,HW,C)


def init_mask_decoder_params(key, transformer_dim, num_multimask_outputs,
                             iou_head_hidden_dim):
    C = transformer_dim
    num_mask_tokens = num_multimask_outputs + 1
    keys = jax.random.split(key, 16)
    k = iter(keys)
    scale = 0.05

    def dense(kk, fan_in, fan_out):
        w = jax.random.normal(kk, (fan_in, fan_out), jnp.float32) * scale
        b = jnp.zeros((fan_out,), jnp.float32)
        return w, b

    params = {}
    params["iou_token"] = jax.random.normal(next(k), (1, C), jnp.float32) * scale
    params["mask_tokens"] = jax.random.normal(next(k), (num_mask_tokens, C), jnp.float32) * scale
    params["up1_w"] = jax.random.normal(next(k), (C, C // 4, 2, 2), jnp.float32) * scale
    params["up1_b"] = jnp.zeros((C // 4,), jnp.float32)
    params["ln_g"] = jnp.ones((C // 4,), jnp.float32)
    params["ln_b"] = jnp.zeros((C // 4,), jnp.float32)
    params["up2_w"] = jax.random.normal(next(k), (C // 4, C // 8, 2, 2), jnp.float32) * scale
    params["up2_b"] = jnp.zeros((C // 8,), jnp.float32)

    Nt = num_mask_tokens
    params["hyper_w1"] = jax.random.normal(next(k), (Nt, C, C), jnp.float32) * scale
    params["hyper_b1"] = jnp.zeros((Nt, 1, C), jnp.float32)
    params["hyper_w2"] = jax.random.normal(next(k), (Nt, C, C), jnp.float32) * scale
    params["hyper_b2"] = jnp.zeros((Nt, 1, C), jnp.float32)
    params["hyper_w3"] = jax.random.normal(next(k), (Nt, C, C // 8), jnp.float32) * scale
    params["hyper_b3"] = jnp.zeros((Nt, 1, C // 8), jnp.float32)

    w1, b1 = dense(next(k), C, iou_head_hidden_dim)
    w2, b2 = dense(next(k), iou_head_hidden_dim, iou_head_hidden_dim)
    w3, b3 = dense(next(k), iou_head_hidden_dim, num_mask_tokens)
    params["iou_head"] = (w1, b1, w2, b2, w3, b3)
    return params


def predict_masks(params, image_embeddings, image_pe,
                  sparse_prompt_embeddings, dense_prompt_embeddings,
                  num_mask_tokens):
    output_tokens = jnp.concatenate([params["iou_token"], params["mask_tokens"]], axis=0)
    Bp = sparse_prompt_embeddings.shape[0]
    output_tokens = jnp.broadcast_to(output_tokens[None], (Bp,) + output_tokens.shape)
    tokens = jnp.concatenate([output_tokens, sparse_prompt_embeddings], axis=1)

    src = _expand_batch(image_embeddings, tokens.shape[0]) + dense_prompt_embeddings
    pos_src = _expand_batch(image_pe, tokens.shape[0])
    b, c, h, w = src.shape

    hs, src_f = simple_two_way_transformer(src, pos_src, tokens)
    iou_token_out = hs[:, 0, :]
    mask_tokens_out = hs[:, 1:1 + num_mask_tokens, :]

    # hypernetwork MLPs + IoU head fused into one small VMEM kernel
    hyper_in, iou_pred = pallas_token_heads(
        mask_tokens_out,
        (params["hyper_w1"], params["hyper_b1"],
         params["hyper_w2"], params["hyper_b2"],
         params["hyper_w3"], params["hyper_b3"]),
        iou_token_out, params["iou_head"])                     # (B,Nt,C/8), (B,Nt)

    # output_upscaling + mask product (channels-last, pixel-shuffle deferred):
    #   ConvT(2,2) -> LayerNorm2d -> GELU                (fused kernel 1)
    #   ConvT(2,2) -> GELU -> block-diag mask matmul      (fused kernel 2)
    x1 = conv_transpose1_ln_gelu(src_f, params["up1_w"], params["up1_b"],
                                 params["ln_g"], params["ln_b"])   # (B, M, 4*C4)
    masks = conv_transpose2_gelu_mask(x1, h, w, params["up2_w"], params["up2_b"],
                                      hyper_in)                    # (B, Nt, 4h, 4w)
    return masks, iou_pred


def mask_decoder_forward(params, image_embeddings, image_pe,
                         sparse_prompt_embeddings, dense_prompt_embeddings,
                         multimask_output, num_mask_tokens):
    masks, iou_pred = predict_masks(params, image_embeddings, image_pe,
                                    sparse_prompt_embeddings,
                                    dense_prompt_embeddings, num_mask_tokens)
    if multimask_output:
        masks = masks[:, 1:, :, :]
        iou_pred = iou_pred[:, 1:]
    else:
        masks = masks[:, 0:1, :, :]
        iou_pred = iou_pred[:, 0:1]
    return masks, iou_pred


# ----------------------------- main -------------------------------------------

if __name__ == "__main__":
    transformer_dim = 64
    num_multimask_outputs = 3
    num_mask_tokens = num_multimask_outputs + 1
    iou_head_hidden_dim = 64
    B = 2          # number of prompt sets
    H = W = 8      # image-embedding spatial size
    n_sparse = 2   # sparse prompt tokens per set

    root = jax.random.PRNGKey(0)
    k_par, k_img, k_pe, k_sparse, k_dense = jax.random.split(root, 5)

    params = init_mask_decoder_params(k_par, transformer_dim,
                                      num_multimask_outputs, iou_head_hidden_dim)

    image_embeddings = jax.random.normal(k_img, (1, transformer_dim, H, W), jnp.float32)
    image_pe = jax.random.normal(k_pe, (1, transformer_dim, H, W), jnp.float32)
    sparse_prompt_embeddings = jax.random.normal(k_sparse, (B, n_sparse, transformer_dim), jnp.float32)
    dense_prompt_embeddings = jax.random.normal(k_dense, (B, transformer_dim, H, W), jnp.float32)

    masks, iou_pred = mask_decoder_forward(
        params, image_embeddings, image_pe,
        sparse_prompt_embeddings, dense_prompt_embeddings,
        multimask_output=True, num_mask_tokens=num_mask_tokens)

    jax.block_until_ready((masks, iou_pred))
    assert masks.shape == (B, num_multimask_outputs, 4 * H, 4 * W), masks.shape
    assert iou_pred.shape == (B, num_multimask_outputs), iou_pred.shape
    print("KERNEL_OK")
</pallas_src>

<mosaic_0001>
module attributes {stable_mosaic.version = 11 : i64} {
  func.func @_heads_kernel(%arg0: memref<4x2x64xbf16, #tpu.memory_space<vmem>>, %arg1: memref<4x64x64xbf16, #tpu.memory_space<vmem>>, %arg2: memref<4x1x64xf32, #tpu.memory_space<vmem>>, %arg3: memref<4x64x64xbf16, #tpu.memory_space<vmem>>, %arg4: memref<4x1x64xf32, #tpu.memory_space<vmem>>, %arg5: memref<4x64x8xbf16, #tpu.memory_space<vmem>>, %arg6: memref<4x1x8xf32, #tpu.memory_space<vmem>>, %arg7: memref<2x64xf32, #tpu.memory_space<vmem>>, %arg8: memref<64x64xf32, #tpu.memory_space<vmem>>, %arg9: memref<1x64xf32, #tpu.memory_space<vmem>>, %arg10: memref<64x64xf32, #tpu.memory_space<vmem>>, %arg11: memref<1x64xf32, #tpu.memory_space<vmem>>, %arg12: memref<64x4xf32, #tpu.memory_space<vmem>>, %arg13: memref<1x4xf32, #tpu.memory_space<vmem>>, %arg14: memref<4x2x8xf32, #tpu.memory_space<vmem>>, %arg15: memref<2x4xf32, #tpu.memory_space<vmem>>) attributes {dimension_semantics = [], scalar_prefetch = 0 : i64, scratch_operands = 0 : i64, tpu.core_type = #tpu.core_type<tc>} {
    %c0 = arith.constant 0 : index
    %c0_0 = arith.constant 0 : index
    %c0_1 = arith.constant 0 : index
    %0 = vector.load %arg0[%c0, %c0_0, %c0_1] : memref<4x2x64xbf16, #tpu.memory_space<vmem>>, vector<1x2x64xbf16>
    %1 = vector.shape_cast %0 : vector<1x2x64xbf16> to vector<2x64xbf16>
    %c0_2 = arith.constant 0 : index
    %c0_3 = arith.constant 0 : index
    %c0_4 = arith.constant 0 : index
    %2 = vector.load %arg1[%c0_2, %c0_3, %c0_4] : memref<4x64x64xbf16, #tpu.memory_space<vmem>>, vector<1x64x64xbf16>
    %3 = vector.shape_cast %2 : vector<1x64x64xbf16> to vector<64x64xbf16>
    %cst = arith.constant dense<0.000000e+00> : vector<2x64xf32>
    %4 = tpu.matmul %1, %3, %cst {dimension_numbers = #tpu.dot_dimension_numbers<[1], [0], [0], [1], [0, 0, 1, 1], [], []>} : vector<2x64xbf16>, vector<64x64xbf16>, vector<2x64xf32> -> vector<2x64xf32>
    %c0_5 = arith.constant 0 : index
    %c0_6 = arith.constant 0 : index
    %c0_7 = arith.constant 0 : index
    %5 = vector.load %arg2[%c0_5, %c0_6, %c0_7] : memref<4x1x64xf32, #tpu.memory_space<vmem>>, vector<1x1x64xf32>
    %6 = vector.shape_cast %5 : vector<1x1x64xf32> to vector<1x64xf32>
    %7 = vector.broadcast %6 : vector<1x64xf32> to vector<2x64xf32>
    %8 = arith.addf %4, %7 : vector<2x64xf32>
    %cst_8 = arith.constant 0.000000e+00 : f32
    %9 = vector.broadcast %cst_8 : f32 to vector<2x64xf32>
    %10 = arith.maximumf %8, %9 : vector<2x64xf32>
    %11 = arith.truncf %10 : vector<2x64xf32> to vector<2x64xbf16>
    %c0_9 = arith.constant 0 : index
    %c0_10 = arith.constant 0 : index
    %c0_11 = arith.constant 0 : index
    %12 = vector.load %arg3[%c0_9, %c0_10, %c0_11] : memref<4x64x64xbf16, #tpu.memory_space<vmem>>, vector<1x64x64xbf16>
    %13 = vector.shape_cast %12 : vector<1x64x64xbf16> to vector<64x64xbf16>
    %cst_12 = arith.constant dense<0.000000e+00> : vector<2x64xf32>
    %14 = tpu.matmul %11, %13, %cst_12 {dimension_numbers = #tpu.dot_dimension_numbers<[1], [0], [0], [1], [0, 0, 1, 1], [], []>} : vector<2x64xbf16>, vector<64x64xbf16>, vector<2x64xf32> -> vector<2x64xf32>
    %c0_13 = arith.constant 0 : index
    %c0_14 = arith.constant 0 : index
    %c0_15 = arith.constant 0 : index
    %15 = vector.load %arg4[%c0_13, %c0_14, %c0_15] : memref<4x1x64xf32, #tpu.memory_space<vmem>>, vector<1x1x64xf32>
    %16 = vector.shape_cast %15 : vector<1x1x64xf32> to vector<1x64xf32>
    %17 = vector.broadcast %16 : vector<1x64xf32> to vector<2x64xf32>
    %18 = arith.addf %14, %17 : vector<2x64xf32>
    %cst_16 = arith.constant 0.000000e+00 : f32
    %19 = vector.broadcast %cst_16 : f32 to vector<2x64xf32>
    %20 = arith.maximumf %18, %19 : vector<2x64xf32>
    %21 = arith.truncf %20 : vector<2x64xf32> to vector<2x64xbf16>
    %c0_17 = arith.constant 0 : index
    %c0_18 = arith.constant 0 : index
    %c0_19 = arith.constant 0 : index
    %22 = vector.load %arg5[%c0_17, %c0_18, %c0_19] : memref<4x64x8xbf16, #tpu.memory_space<vmem>>, vector<1x64x8xbf16>
    %23 = vector.shape_cast %22 : vector<1x64x8xbf16> to vector<64x8xbf16>
    %cst_20 = arith.constant dense<0.000000e+00> : vector<2x8xf32>
    %24 = tpu.matmul %21, %23, %cst_20 {dimension_numbers = #tpu.dot_dimension_numbers<[1], [0], [0], [1], [0, 0, 1, 1], [], []>} : vector<2x64xbf16>, vector<64x8xbf16>, vector<2x8xf32> -> vector<2x8xf32>
    %c0_21 = arith.constant 0 : index
    %c0_22 = arith.constant 0 : index
    %c0_23 = arith.constant 0 : index
    %25 = vector.load %arg6[%c0_21, %c0_22, %c0_23] : memref<4x1x8xf32, #tpu.memory_space<vmem>>, vector<1x1x8xf32>
    %26 = vector.shape_cast %25 : vector<1x1x8xf32> to vector<1x8xf32>
    %27 = vector.broadcast %26 : vector<1x8xf32> to vector<2x8xf32>
    %28 = arith.addf %24, %27 : vector<2x8xf32>
    %c0_24 = arith.constant 0 : index
    %c0_25 = arith.constant 0 : index
    %c0_26 = arith.constant 0 : index
    %29 = vector.load %arg14[%c0_24, %c0_25, %c0_26] : memref<4x2x8xf32, #tpu.memory_space<vmem>>, vector<1x2x8xf32>
    %30 = vector.shape_cast %29 : vector<1x2x8xf32> to vector<2x8xf32>
    %31 = vector.shape_cast %28 : vector<2x8xf32> to vector<1x2x8xf32>
    tpu.vector_store %arg14[%c0_24, %c0_25, %c0_26], %31 {strides = array<i32>} : memref<4x2x8xf32, #tpu.memory_space<vmem>>, vector<1x2x8xf32>,
    %c1 = arith.constant 1 : index
    %c0_27 = arith.constant 0 : index
    %c0_28 = arith.constant 0 : index
    %32 = vector.load %arg0[%c1, %c0_27, %c0_28] : memref<4x2x64xbf16, #tpu.memory_space<vmem>>, vector<1x2x64xbf16>
    %33 = vector.shape_cast %32 : vector<1x2x64xbf16> to vector<2x64xbf16>
    %c1_29 = arith.constant 1 : index
    %c0_30 = arith.constant 0 : index
    %c0_31 = arith.constant 0 : index
    %34 = vector.load %arg1[%c1_29, %c0_30, %c0_31] : memref<4x64x64xbf16, #tpu.memory_space<vmem>>, vector<1x64x64xbf16>
    %35 = vector.shape_cast %34 : vector<1x64x64xbf16> to vector<64x64xbf16>
    %cst_32 = arith.constant dense<0.000000e+00> : vector<2x64xf32>
    %36 = tpu.matmul %33, %35, %cst_32 {dimension_numbers = #tpu.dot_dimension_numbers<[1], [0], [0], [1], [0, 0, 1, 1], [], []>} : vector<2x64xbf16>, vector<64x64xbf16>, vector<2x64xf32> -> vector<2x64xf32>
    %c1_33 = arith.constant 1 : index
    %c0_34 = arith.constant 0 : index
    %c0_35 = arith.constant 0 : index
    %37 = vector.load %arg2[%c1_33, %c0_34, %c0_35] : memref<4x1x64xf32, #tpu.memory_space<vmem>>, vector<1x1x64xf32>
    %38 = vector.shape_cast %37 : vector<1x1x64xf32> to vector<1x64xf32>
    %39 = vector.broadcast %38 : vector<1x64xf32> to vector<2x64xf32>
    %40 = arith.addf %36, %39 : vector<2x64xf32>
    %cst_36 = arith.constant 0.000000e+00 : f32
    %41 = vector.broadcast %cst_36 : f32 to vector<2x64xf32>
    %42 = arith.maximumf %40, %41 : vector<2x64xf32>
    %43 = arith.truncf %42 : vector<2x64xf32> to vector<2x64xbf16>
    %c1_37 = arith.constant 1 : index
    %c0_38 = arith.constant 0 : index
    %c0_39 = arith.constant 0 : index
    %44 = vector.load %arg3[%c1_37, %c0_38, %c0_39] : memref<4x64x64xbf16, #tpu.memory_space<vmem>>, vector<1x64x64xbf16>
    %45 = vector.shape_cast %44 : vector<1x64x64xbf16> to vector<64x64xbf16>
    %cst_40 = arith.constant dense<0.000000e+00> : vector<2x64xf32>
    %46 = tpu.matmul %43, %45, %cst_40 {dimension_numbers = #tpu.dot_dimension_numbers<[1], [0], [0], [1], [0, 0, 1, 1], [], []>} : vector<2x64xbf16>, vector<64x64xbf16>, vector<2x64xf32> -> vector<2x64xf32>
    %c1_41 = arith.constant 1 : index
    %c0_42 = arith.constant 0 : index
    %c0_43 = arith.constant 0 : index
    %47 = vector.load %arg4[%c1_41, %c0_42, %c0_43] : memref<4x1x64xf32, #tpu.memory_space<vmem>>, vector<1x1x64xf32>
    %48 = vector.shape_cast %47 : vector<1x1x64xf32> to vector<1x64xf32>
    %49 = vector.broadcast %48 : vector<1x64xf32> to vector<2x64xf32>
    %50 = arith.addf %46, %49 : vector<2x64xf32>
    %cst_44 = arith.constant 0.000000e+00 : f32
    %51 = vector.broadcast %cst_44 : f32 to vector<2x64xf32>
    %52 = arith.maximumf %50, %51 : vector<2x64xf32>
    %53 = arith.truncf %52 : vector<2x64xf32> to vector<2x64xbf16>
    %c1_45 = arith.constant 1 : index
    %c0_46 = arith.constant 0 : index
    %c0_47 = arith.constant 0 : index
    %54 = vector.load %arg5[%c1_45, %c0_46, %c0_47] : memref<4x64x8xbf16, #tpu.memory_space<vmem>>, vector<1x64x8xbf16>
    %55 = vector.shape_cast %54 : vector<1x64x8xbf16> to vector<64x8xbf16>
    %cst_48 = arith.constant dense<0.000000e+00> : vector<2x8xf32>
    %56 = tpu.matmul %53, %55, %cst_48 {dimension_numbers = #tpu.dot_dimension_numbers<[1], [0], [0], [1], [0, 0, 1, 1], [], []>} : vector<2x64xbf16>, vector<64x8xbf16>, vector<2x8xf32> -> vector<2x8xf32>
    %c1_49 = arith.constant 1 : index
    %c0_50 = arith.constant 0 : index
    %c0_51 = arith.constant 0 : index
    %57 = vector.load %arg6[%c1_49, %c0_50, %c0_51] : memref<4x1x8xf32, #tpu.memory_space<vmem>>, vector<1x1x8xf32>
    %58 = vector.shape_cast %57 : vector<1x1x8xf32> to vector<1x8xf32>
    %59 = vector.broadcast %58 : vector<1x8xf32> to vector<2x8xf32>
    %60 = arith.addf %56, %59 : vector<2x8xf32>
    %c1_52 = arith.constant 1 : index
    %c0_53 = arith.constant 0 : index
    %c0_54 = arith.constant 0 : index
    %61 = vector.load %arg14[%c1_52, %c0_53, %c0_54] : memref<4x2x8xf32, #tpu.memory_space<vmem>>, vector<1x2x8xf32>
    %62 = vector.shape_cast %61 : vector<1x2x8xf32> to vector<2x8xf32>
    %63 = vector.shape_cast %60 : vector<2x8xf32> to vector<1x2x8xf32>
    tpu.vector_store %arg14[%c1_52, %c0_53, %c0_54], %63 {strides = array<i32>} : memref<4x2x8xf32, #tpu.memory_space<vmem>>, vector<1x2x8xf32>,
    %c2 = arith.constant 2 : index
    %c0_55 = arith.constant 0 : index
    %c0_56 = arith.constant 0 : index
    %64 = vector.load %arg0[%c2, %c0_55, %c0_56] : memref<4x2x64xbf16, #tpu.memory_space<vmem>>, vector<1x2x64xbf16>
    %65 = vector.shape_cast %64 : vector<1x2x64xbf16> to vector<2x64xbf16>
    %c2_57 = arith.constant 2 : index
    %c0_58 = arith.constant 0 : index
    %c0_59 = arith.constant 0 : index
    %66 = vector.load %arg1[%c2_57, %c0_58, %c0_59] : memref<4x64x64xbf16, #tpu.memory_space<vmem>>, vector<1x64x64xbf16>
    %67 = vector.shape_cast %66 : vector<1x64x64xbf16> to vector<64x64xbf16>
    %cst_60 = arith.constant dense<0.000000e+00> : vector<2x64xf32>
    %68 = tpu.matmul %65, %67, %cst_60 {dimension_numbers = #tpu.dot_dimension_numbers<[1], [0], [0], [1], [0, 0, 1, 1], [], []>} : vector<2x64xbf16>, vector<64x64xbf16>, vector<2x64xf32> -> vector<2x64xf32>
    %c2_61 = arith.constant 2 : index
    %c0_62 = arith.constant 0 : index
    %c0_63 = arith.constant 0 : index
    %69 = vector.load %arg2[%c2_61, %c0_62, %c0_63] : memref<4x1x64xf32, #tpu.memory_space<vmem>>, vector<1x1x64xf32>
    %70 = vector.shape_cast %69 : vector<1x1x64xf32> to vector<1x64xf32>
    %71 = vector.broadcast %70 : vector<1x64xf32> to vector<2x64xf32>
    %72 = arith.addf %68, %71 : vector<2x64xf32>
    %cst_64 = arith.constant 0.000000e+00 : f32
    %73 = vector.broadcast %cst_64 : f32 to vector<2x64xf32>
    %74 = arith.maximumf %72, %73 : vector<2x64xf32>
    %75 = arith.truncf %74 : vector<2x64xf32> to vector<2x64xbf16>
    %c2_65 = arith.constant 2 : index
    %c0_66 = arith.constant 0 : index
    %c0_67 = arith.constant 0 : index
    %76 = vector.load %arg3[%c2_65, %c0_66, %c0_67] : memref<4x64x64xbf16, #tpu.memory_space<vmem>>, vector<1x64x64xbf16>
    %77 = vector.shape_cast %76 : vector<1x64x64xbf16> to vector<64x64xbf16>
    %cst_68 = arith.constant dense<0.000000e+00> : vector<2x64xf32>
    %78 = tpu.matmul %75, %77, %cst_68 {dimension_numbers = #tpu.dot_dimension_numbers<[1], [0], [0], [1], [0, 0, 1, 1], [], []>} : vector<2x64xbf16>, vector<64x64xbf16>, vector<2x64xf32> -> vector<2x64xf32>
    %c2_69 = arith.constant 2 : index
    %c0_70 = arith.constant 0 : index
    %c0_71 = arith.constant 0 : index
    %79 = vector.load %arg4[%c2_69, %c0_70, %c0_71] : memref<4x1x64xf32, #tpu.memory_space<vmem>>, vector<1x1x64xf32>
    %80 = vector.shape_cast %79 : vector<1x1x64xf32> to vector<1x64xf32>
    %81 = vector.broadcast %80 : vector<1x64xf32> to vector<2x64xf32>
    %82 = arith.addf %78, %81 : vector<2x64xf32>
    %cst_72 = arith.constant 0.000000e+00 : f32
    %83 = vector.broadcast %cst_72 : f32 to vector<2x64xf32>
    %84 = arith.maximumf %82, %83 : vector<2x64xf32>
    %85 = arith.truncf %84 : vector<2x64xf32> to vector<2x64xbf16>
    %c2_73 = arith.constant 2 : index
    %c0_74 = arith.constant 0 : index
    %c0_75 = arith.constant 0 : index
    %86 = vector.load %arg5[%c2_73, %c0_74, %c0_75] : memref<4x64x8xbf16, #tpu.memory_space<vmem>>, vector<1x64x8xbf16>
    %87 = vector.shape_cast %86 : vector<1x64x8xbf16> to vector<64x8xbf16>
    %cst_76 = arith.constant dense<0.000000e+00> : vector<2x8xf32>
    %88 = tpu.matmul %85, %87, %cst_76 {dimension_numbers = #tpu.dot_dimension_numbers<[1], [0], [0], [1], [0, 0, 1, 1], [], []>} : vector<2x64xbf16>, vector<64x8xbf16>, vector<2x8xf32> -> vector<2x8xf32>
    %c2_77 = arith.constant 2 : index
    %c0_78 = arith.constant 0 : index
    %c0_79 = arith.constant 0 : index
    %89 = vector.load %arg6[%c2_77, %c0_78, %c0_79] : memref<4x1x8xf32, #tpu.memory_space<vmem>>, vector<1x1x8xf32>
    %90 = vector.shape_cast %89 : vector<1x1x8xf32> to vector<1x8xf32>
    %91 = vector.broadcast %90 : vector<1x8xf32> to vector<2x8xf32>
    %92 = arith.addf %88, %91 : vector<2x8xf32>
    %c2_80 = arith.constant 2 : index
    %c0_81 = arith.constant 0 : index
    %c0_82 = arith.constant 0 : index
    %93 = vector.load %arg14[%c2_80, %c0_81, %c0_82] : memref<4x2x8xf32, #tpu.memory_space<vmem>>, vector<1x2x8xf32>
    %94 = vector.shape_cast %93 : vector<1x2x8xf32> to vector<2x8xf32>
    %95 = vector.shape_cast %92 : vector<2x8xf32> to vector<1x2x8xf32>
    tpu.vector_store %arg14[%c2_80, %c0_81, %c0_82], %95 {strides = array<i32>} : memref<4x2x8xf32, #tpu.memory_space<vmem>>, vector<1x2x8xf32>,
    %c3 = arith.constant 3 : index
    %c0_83 = arith.constant 0 : index
    %c0_84 = arith.constant 0 : index
    %96 = vector.load %arg0[%c3, %c0_83, %c0_84] : memref<4x2x64xbf16, #tpu.memory_space<vmem>>, vector<1x2x64xbf16>
    %97 = vector.shape_cast %96 : vector<1x2x64xbf16> to vector<2x64xbf16>
    %c3_85 = arith.constant 3 : index
    %c0_86 = arith.constant 0 : index
    %c0_87 = arith.constant 0 : index
    %98 = vector.load %arg1[%c3_85, %c0_86, %c0_87] : memref<4x64x64xbf16, #tpu.memory_space<vmem>>, vector<1x64x64xbf16>
    %99 = vector.shape_cast %98 : vector<1x64x64xbf16> to vector<64x64xbf16>
    %cst_88 = arith.constant dense<0.000000e+00> : vector<2x64xf32>
    %100 = tpu.matmul %97, %99, %cst_88 {dimension_numbers = #tpu.dot_dimension_numbers<[1], [0], [0], [1], [0, 0, 1, 1], [], []>} : vector<2x64xbf16>, vector<64x64xbf16>, vector<2x64xf32> -> vector<2x64xf32>
    %c3_89 = arith.constant 3 : index
    %c0_90 = arith.constant 0 : index
    %c0_91 = arith.constant 0 : index
    %101 = vector.load %arg2[%c3_89, %c0_90, %c0_91] : memref<4x1x64xf32, #tpu.memory_space<vmem>>, vector<1x1x64xf32>
    %102 = vector.shape_cast %101 : vector<1x1x64xf32> to vector<1x64xf32>
    %103 = vector.broadcast %102 : vector<1x64xf32> to vector<2x64xf32>
    %104 = arith.addf %100, %103 : vector<2x64xf32>
    %cst_92 = arith.constant 0.000000e+00 : f32
    %105 = vector.broadcast %cst_92 : f32 to vector<2x64xf32>
    %106 = arith.maximumf %104, %105 : vector<2x64xf32>
    %107 = arith.truncf %106 : vector<2x64xf32> to vector<2x64xbf16>
    %c3_93 = arith.constant 3 : index
    %c0_94 = arith.constant 0 : index
    %c0_95 = arith.constant 0 : index
    %108 = vector.load %arg3[%c3_93, %c0_94, %c0_95] : memref<4x64x64xbf16, #tpu.memory_space<vmem>>, vector<1x64x64xbf16>
    %109 = vector.shape_cast %108 : vector<1x64x64xbf16> to vector<64x64xbf16>
    %cst_96 = arith.constant dense<0.000000e+00> : vector<2x64xf32>
    %110 = tpu.matmul %107, %109, %cst_96 {dimension_numbers = #tpu.dot_dimension_numbers<[1], [0], [0], [1], [0, 0, 1, 1], [], []>} : vector<2x64xbf16>, vector<64x64xbf16>, vector<2x64xf32> -> vector<2x64xf32>
    %c3_97 = arith.constant 3 : index
    %c0_98 = arith.constant 0 : index
    %c0_99 = arith.constant 0 : index
    %111 = vector.load %arg4[%c3_97, %c0_98, %c0_99] : memref<4x1x64xf32, #tpu.memory_space<vmem>>, vector<1x1x64xf32>
    %112 = vector.shape_cast %111 : vector<1x1x64xf32> to vector<1x64xf32>
    %113 = vector.broadcast %112 : vector<1x64xf32> to vector<2x64xf32>
    %114 = arith.addf %110, %113 : vector<2x64xf32>
    %cst_100 = arith.constant 0.000000e+00 : f32
    %115 = vector.broadcast %cst_100 : f32 to vector<2x64xf32>
    %116 = arith.maximumf %114, %115 : vector<2x64xf32>
    %117 = arith.truncf %116 : vector<2x64xf32> to vector<2x64xbf16>
    %c3_101 = arith.constant 3 : index
    %c0_102 = arith.constant 0 : index
    %c0_103 = arith.constant 0 : index
    %118 = vector.load %arg5[%c3_101, %c0_102, %c0_103] : memref<4x64x8xbf16, #tpu.memory_space<vmem>>, vector<1x64x8xbf16>
    %119 = vector.shape_cast %118 : vector<1x64x8xbf16> to vector<64x8xbf16>
    %cst_104 = arith.constant dense<0.000000e+00> : vector<2x8xf32>
    %120 = tpu.matmul %117, %119, %cst_104 {dimension_numbers = #tpu.dot_dimension_numbers<[1], [0], [0], [1], [0, 0, 1, 1], [], []>} : vector<2x64xbf16>, vector<64x8xbf16>, vector<2x8xf32> -> vector<2x8xf32>
    %c3_105 = arith.constant 3 : index
    %c0_106 = arith.constant 0 : index
    %c0_107 = arith.constant 0 : index
    %121 = vector.load %arg6[%c3_105, %c0_106, %c0_107] : memref<4x1x8xf32, #tpu.memory_space<vmem>>, vector<1x1x8xf32>
    %122 = vector.shape_cast %121 : vector<1x1x8xf32> to vector<1x8xf32>
    %123 = vector.broadcast %122 : vector<1x8xf32> to vector<2x8xf32>
    %124 = arith.addf %120, %123 : vector<2x8xf32>
    %c3_108 = arith.constant 3 : index
    %c0_109 = arith.constant 0 : index
    %c0_110 = arith.constant 0 : index
    %125 = vector.load %arg14[%c3_108, %c0_109, %c0_110] : memref<4x2x8xf32, #tpu.memory_space<vmem>>, vector<1x2x8xf32>
    %126 = vector.shape_cast %125 : vector<1x2x8xf32> to vector<2x8xf32>
    %127 = vector.shape_cast %124 : vector<2x8xf32> to vector<1x2x8xf32>
    tpu.vector_store %arg14[%c3_108, %c0_109, %c0_110], %127 {strides = array<i32>} : memref<4x2x8xf32, #tpu.memory_space<vmem>>, vector<1x2x8xf32>,
    %c0_111 = arith.constant 0 : index
    %c0_112 = arith.constant 0 : index
    %128 = vector.load %arg7[%c0_111, %c0_112] : memref<2x64xf32, #tpu.memory_space<vmem>>, vector<2x64xf32>
    %c0_113 = arith.constant 0 : index
    %c0_114 = arith.constant 0 : index
    %129 = vector.load %arg8[%c0_113, %c0_114] : memref<64x64xf32, #tpu.memory_space<vmem>>, vector<64x64xf32>
    %cst_115 = arith.constant dense<0.000000e+00> : vector<2x64xf32>
    %130 = tpu.matmul %128, %129, %cst_115 {dimension_numbers = #tpu.dot_dimension_numbers<[1], [0], [0], [1], [0, 0, 1, 1], [], []>} : vector<2x64xf32>, vector<64x64xf32>, vector<2x64xf32> -> vector<2x64xf32>
    %c0_116 = arith.constant 0 : index
    %c0_117 = arith.constant 0 : index
    %131 = vector.load %arg9[%c0_116, %c0_117] : memref<1x64xf32, #tpu.memory_space<vmem>>, vector<1x64xf32>
    %132 = vector.broadcast %131 : vector<1x64xf32> to vector<2x64xf32>
    %133 = arith.addf %130, %132 : vector<2x64xf32>
    %cst_118 = arith.constant 0.000000e+00 : f32
    %134 = vector.broadcast %cst_118 : f32 to vector<2x64xf32>
    %135 = arith.maximumf %133, %134 : vector<2x64xf32>
    %c0_119 = arith.constant 0 : index
    %c0_120 = arith.constant 0 : index
    %136 = vector.load %arg10[%c0_119, %c0_120] : memref<64x64xf32, #tpu.memory_space<vmem>>, vector<64x64xf32>
    %cst_121 = arith.constant dense<0.000000e+00> : vector<2x64xf32>
    %137 = tpu.matmul %135, %136, %cst_121 {dimension_numbers = #tpu.dot_dimension_numbers<[1], [0], [0], [1], [0, 0, 1, 1], [], []>} : vector<2x64xf32>, vector<64x64xf32>, vector<2x64xf32> -> vector<2x64xf32>
    %c0_122 = arith.constant 0 : index
    %c0_123 = arith.constant 0 : index
    %138 = vector.load %arg11[%c0_122, %c0_123] : memref<1x64xf32, #tpu.memory_space<vmem>>, vector<1x64xf32>
    %139 = vector.broadcast %138 : vector<1x64xf32> to vector<2x64xf32>
    %140 = arith.addf %137, %139 : vector<2x64xf32>
    %cst_124 = arith.constant 0.000000e+00 : f32
    %141 = vector.broadcast %cst_124 : f32 to vector<2x64xf32>
    %142 = arith.maximumf %140, %141 : vector<2x64xf32>
    %c0_125 = arith.constant 0 : index
    %c0_126 = arith.constant 0 : index
    %143 = vector.load %arg12[%c0_125, %c0_126] : memref<64x4xf32, #tpu.memory_space<vmem>>, vector<64x4xf32>
    %cst_127 = arith.constant dense<0.000000e+00> : vector<2x4xf32>
    %144 = tpu.matmul %142, %143, %cst_127 {dimension_numbers = #tpu.dot_dimension_numbers<[1], [0], [0], [1], [0, 0, 1, 1], [], []>} : vector<2x64xf32>, vector<64x4xf32>, vector<2x4xf32> -> vector<2x4xf32>
    %c0_128 = arith.constant 0 : index
    %c0_129 = arith.constant 0 : index
    %145 = vector.load %arg13[%c0_128, %c0_129] : memref<1x4xf32, #tpu.memory_space<vmem>>, vector<1x4xf32>
    %146 = vector.broadcast %145 : vector<1x4xf32> to vector<2x4xf32>
    %147 = arith.addf %144, %146 : vector<2x4xf32>
    %c0_130 = arith.constant 0 : index
    %c0_131 = arith.constant 0 : index
    %148 = vector.load %arg15[%c0_130, %c0_131] : memref<2x4xf32, #tpu.memory_space<vmem>>, vector<2x4xf32>
    tpu.vector_store %arg15[%c0_130, %c0_131], %147 {strides = array<i32>} : memref<2x4xf32, #tpu.memory_space<vmem>>, vector<2x4xf32>,
    return
  }
}

</mosaic_0001>

<llo_original>
// kernel: tpu_custom_call.1
$region0: #{tpu_custom_call.1}
  #allocation0 [shape = 'u32[]', space=smem, size = 0x4, offset = 0x4, fixed_abs, tag = 'smem constant byte address 0x4 - core index']
  #allocation1 [shape = 'u32[72,128]{1,0:T(1,128)}', space=vmem, size = 0x9000, scoped, tag = 'internal scratch']
  %s0 = inlined_call_operand.vmem [shape: bf16[4,2,64], index: 0, kind: input, shape index: {}]
  %s1 = inlined_call_operand.vmem [shape: bf16[4,64,64], index: 1, kind: input, shape index: {}]
  %s2 = inlined_call_operand.hbm [shape: f32[4,1,64], index: 2, kind: input, shape index: {}]
  %s3 = inlined_call_operand.hbm [shape: bf16[4,64,64], index: 3, kind: input, shape index: {}]
  %s4 = inlined_call_operand.hbm [shape: f32[4,1,64], index: 4, kind: input, shape index: {}]
  %s5 = inlined_call_operand.vmem [shape: bf16[4,64,8], index: 5, kind: input, shape index: {}]
  %s6 = inlined_call_operand.hbm [shape: f32[4,1,8], index: 6, kind: input, shape index: {}]
  %s7 = inlined_call_operand.vmem [shape: f32[2,64], index: 7, kind: input, shape index: {}]
  %s8 = inlined_call_operand.vmem [shape: f32[64,64], index: 8, kind: input, shape index: {}]
  %s9 = inlined_call_operand.vmem [shape: f32[1,64], index: 9, kind: input, shape index: {}]
  %s10 = inlined_call_operand.hbm [shape: f32[64,64], index: 10, kind: input, shape index: {}]
  %s11 = inlined_call_operand.vmem [shape: f32[1,64], index: 11, kind: input, shape index: {}]
  %s12 = inlined_call_operand.vmem [shape: f32[64,4], index: 12, kind: input, shape index: {}]
  %s13 = inlined_call_operand.vmem [shape: f32[1,4], index: 13, kind: input, shape index: {}]
  %s14 = inlined_call_operand.hbm [shape: f32[4,2,8], index: 14, kind: output, shape index: {0}]
  %s15 = inlined_call_operand.hbm [shape: f32[2,4], index: 15, kind: output, shape index: {1}]
  %16 = xla_tuple %s14, %s15
  %s17 = sld [smem:[#allocation0]]
  $region94: #{tpu_custom_call.1} parent=0
    _
  %s19 = ssub.s32 1, %s17
  %s20 = scalar_select 0, %s19, %s17
  $region1: #{tpu_custom_call.1} parent=0
    #allocation2 [shape = 'u8[2048]{0}', space=vmem, size = 0x800, scoped, tag = 'input window, operand 2, single buffered']
    #allocation3 [shape = 's32[1]{0}', space=sflag, size = 0x4, scoped, tag = 'scoped memory for tpu_custom_call.1']
    #allocation4 [shape = 's32[1]{0}', space=sflag, size = 0x4, scoped, tag = 'scoped memory for tpu_custom_call.1']
    #allocation5 [shape = 'u8[65536]{0}', space=vmem, size = 0x10000, scoped, tag = 'input window, operand 3, single buffered']
    #allocation6 [shape = 's32[1]{0}', space=sflag, size = 0x4, scoped, tag = 'scoped memory for tpu_custom_call.1']
    #allocation7 [shape = 'u8[2048]{0}', space=vmem, size = 0x800, scoped, tag = 'input window, operand 4, single buffered']
    #allocation8 [shape = 'u8[2048]{0}', space=vmem, size = 0x800, scoped, tag = 'input window, operand 6, single buffered']
    #allocation9 [shape = 's32[1]{0}', space=sflag, size = 0x4, scoped, tag = 'scoped memory for tpu_custom_call.1']
    #allocation10 [shape = 'u8[32768]{0}', space=vmem, size = 0x8000, scoped, tag = 'input window, operand 10, single buffered']
    #allocation11 [shape = 'u8[4096]{0}', space=vmem, size = 0x1000, scoped, tag = 'output window, operand 0, single buffered']
    #allocation12 [shape = 'u8[1024]{0}', space=vmem, size = 0x400, scoped, tag = 'output window, operand 1, single buffered']
    #allocation13 [shape = 's32[1]{0}', space=sflag, size = 0x4, scoped, tag = 'scoped memory for tpu_custom_call.1']
    %21 = vsyncpa [#allocation3], 0
    %22 = vsyncpa [#allocation6], 0
    %23 = vsyncpa [#allocation9], 0
    %24 = vsyncpa [#allocation4], 0
    %25 = vsyncpa [#allocation13], 0
    // Predicated region
    $region2: #{tpu_custom_call.1} parent=1 // pred_check
      _
    $region3: #{tpu_custom_call.1} parent=1 // pred_check_branch
      %27 = sbr.rel (0) target = $region5
    $region4: #{tpu_custom_call.1} parent=1 // pred_region
      _
    $region5: #{tpu_custom_call.1} parent=1 // pred_fallthru
      _
    // Predicated region
    $region6: #{tpu_custom_call.1} parent=1 // pred_check
      _
    $region7: #{tpu_custom_call.1} parent=1 // pred_check_branch
      %29 = sbr.rel (0) target = $region9
    $region8: #{tpu_custom_call.1} parent=1 // pred_region
      _
    $region9: #{tpu_custom_call.1} parent=1 // pred_fallthru
      _
    // Predicated region
    $region10: #{tpu_custom_call.1} parent=1 // pred_check
      _
    $region11: #{tpu_custom_call.1} parent=1 // pred_check_branch
      %31 = sbr.rel (0) target = $region13
    $region12: #{tpu_custom_call.1} parent=1 // pred_region
      %33 = vsyncadd [#allocation3], 0
      %s34 = sshll.u32 %s2, 4
      %s35 = int_to_ptr.hbm [resolvable:$true] %s34
      %s36 = sshll.u32 [#allocation2], 4
      %s37 = int_to_ptr.vmem [resolvable:$true] %s36
      %42 = dma.hbm_to_vmem [thread:$0]  %s35, 64, %s37, [#allocation3], 16, 16, 1
    $region13: #{tpu_custom_call.1} parent=1 // pred_fallthru
      _
    // Predicated region
    $region14: #{tpu_custom_call.1} parent=1 // pred_check
      _
    $region15: #{tpu_custom_call.1} parent=1 // pred_check_branch
      %44 = sbr.rel (0) target = $region17
    $region16: #{tpu_custom_call.1} parent=1 // pred_region
      %46 = vsyncadd [#allocation6], 0
      %s47 = sshll.u32 %s3, 4
      %s48 = int_to_ptr.hbm [resolvable:$true] %s47
      %s49 = sshll.u32 [#allocation5], 4
      %s50 = int_to_ptr.vmem [resolvable:$true] %s49
      %55 = dma.hbm_to_vmem [thread:$0]  %s48, 2048, %s50, [#allocation6], 64, 64, 4
    $region17: #{tpu_custom_call.1} parent=1 // pred_fallthru
      _
    // Predicated region
    $region18: #{tpu_custom_call.1} parent=1 // pred_check
      _
    $region19: #{tpu_custom_call.1} parent=1 // pred_check_branch
      %57 = sbr.rel (0) target = $region21
    $region20: #{tpu_custom_call.1} parent=1 // pred_region
      %59 = vsyncadd [#allocation6], 0
      %s60 = sshll.u32 %s4, 4
      %s61 = int_to_ptr.hbm [resolvable:$true] %s60
      %s62 = sshll.u32 [#allocation7], 4
      %s63 = int_to_ptr.vmem [resolvable:$true] %s62
      %68 = dma.hbm_to_vmem [thread:$0]  %s61, 64, %s63, [#allocation6], 16, 16, 1
    $region21: #{tpu_custom_call.1} parent=1 // pred_fallthru
      _
    // Predicated region
    $region22: #{tpu_custom_call.1} parent=1 // pred_check
      _
    $region23: #{tpu_custom_call.1} parent=1 // pred_check_branch
      %70 = sbr.rel (0) target = $region25
    $region24: #{tpu_custom_call.1} parent=1 // pred_region
      _
    $region25: #{tpu_custom_call.1} parent=1 // pred_fallthru
      _
    // Predicated region
    $region26: #{tpu_custom_call.1} parent=1 // pred_check
      _
    $region27: #{tpu_custom_call.1} parent=1 // pred_check_branch
      %72 = sbr.rel (0) target = $region29
    $region28: #{tpu_custom_call.1} parent=1 // pred_region
      %74 = vsyncadd [#allocation9], 0
      %s75 = sshll.u32 %s6, 4
      %s76 = int_to_ptr.hbm [resolvable:$true] %s75
      %s77 = sshll.u32 [#allocation8], 4
      %s78 = int_to_ptr.vmem [resolvable:$true] %s77
      %83 = dma.hbm_to_vmem [thread:$0]  %s76, 64, %s78, [#allocation9], 16, 16, 1
    $region29: #{tpu_custom_call.1} parent=1 // pred_fallthru
      _
    // Predicated region
    $region30: #{tpu_custom_call.1} parent=1 // pred_check
      _
    $region31: #{tpu_custom_call.1} parent=1 // pred_check_branch
      %85 = sbr.rel (0) target = $region33
    $region32: #{tpu_custom_call.1} parent=1 // pred_region
      _
    $region33: #{tpu_custom_call.1} parent=1 // pred_fallthru
      _
    // Predicated region
    $region34: #{tpu_custom_call.1} parent=1 // pred_check
      _
    $region35: #{tpu_custom_call.1} parent=1 // pred_check_branch
      %87 = sbr.rel (0) target = $region37
    $region36: #{tpu_custom_call.1} parent=1 // pred_region
      _
    $region37: #{tpu_custom_call.1} parent=1 // pred_fallthru
      _
    // Predicated region
    $region38: #{tpu_custom_call.1} parent=1 // pred_check
      _
    $region39: #{tpu_custom_call.1} parent=1 // pred_check_branch
      %89 = sbr.rel (0) target = $region41
    $region40: #{tpu_custom_call.1} parent=1 // pred_region
      _
    $region41: #{tpu_custom_call.1} parent=1 // pred_fallthru
      _
    // Predicated region
    $region42: #{tpu_custom_call.1} parent=1 // pred_check
      _
    $region43: #{tpu_custom_call.1} parent=1 // pred_check_branch
      %91 = sbr.rel (0) target = $region45
    $region44: #{tpu_custom_call.1} parent=1 // pred_region
      %93 = vsyncadd [#allocation9], 0
      %s94 = sshll.u32 %s10, 4
      %s95 = int_to_ptr.hbm [resolvable:$true] %s94
      %s96 = sshll.u32 [#allocation10], 4
      %s97 = int_to_ptr.vmem [resolvable:$true] %s96
      %102 = dma.hbm_to_vmem [thread:$0]  %s95, 1024, %s97, [#allocation9], 128, 128, 8
    $region45: #{tpu_custom_call.1} parent=1 // pred_fallthru
      _
    // Predicated region
    $region46: #{tpu_custom_call.1} parent=1 // pred_check
      _
    $region47: #{tpu_custom_call.1} parent=1 // pred_check_branch
      %104 = sbr.rel (0) target = $region49
    $region48: #{tpu_custom_call.1} parent=1 // pred_region
      _
    $region49: #{tpu_custom_call.1} parent=1 // pred_fallthru
      _
    // Predicated region
    $region50: #{tpu_custom_call.1} parent=1 // pred_check
      _
    $region51: #{tpu_custom_call.1} parent=1 // pred_check_branch
      %106 = sbr.rel (0) target = $region53
    $region52: #{tpu_custom_call.1} parent=1 // pred_region
      _
    $region53: #{tpu_custom_call.1} parent=1 // pred_fallthru
      _
    // Predicated region
    $region54: #{tpu_custom_call.1} parent=1 // pred_check
      _
    $region55: #{tpu_custom_call.1} parent=1 // pred_check_branch
      %108 = sbr.rel (0) target = $region57
    $region56: #{tpu_custom_call.1} parent=1 // pred_region
      _
    $region57: #{tpu_custom_call.1} parent=1 // pred_fallthru
      _
    // Predicated region
    $region58: #{tpu_custom_call.1} parent=1 // pred_check
      _
    $region59: #{tpu_custom_call.1} parent=1 // pred_check_branch
      %110 = sbr.rel (0) target = $region61
    $region60: #{tpu_custom_call.1} parent=1 // pred_region
      %112 = dma.done [#allocation3], 64
    $region61: #{tpu_custom_call.1} parent=1 // pred_fallthru
      _
    // Predicated region
    $region62: #{tpu_custom_call.1} parent=1 // pred_check
      _
    $region63: #{tpu_custom_call.1} parent=1 // pred_check_branch
      %114 = sbr.rel (0) target = $region65
    $region64: #{tpu_custom_call.1} parent=1 // pred_region
      %116 = dma.done [#allocation6], 2048
    $region65: #{tpu_custom_call.1} parent=1 // pred_fallthru
      _
    // Predicated region
    $region66: #{tpu_custom_call.1} parent=1 // pred_check
      _
    $region67: #{tpu_custom_call.1} parent=1 // pred_check_branch
      %118 = sbr.rel (0) target = $region69
    $region68: #{tpu_custom_call.1} parent=1 // pred_region
      %120 = dma.done [#allocation6], 64
    $region69: #{tpu_custom_call.1} parent=1 // pred_fallthru
      _
    // Predicated region
    $region70: #{tpu_custom_call.1} parent=1 // pred_check
      _
    $region71: #{tpu_custom_call.1} parent=1 // pred_check_branch
      %122 = sbr.rel (0) target = $region73
    $region72: #{tpu_custom_call.1} parent=1 // pred_region
      %124 = dma.done [#allocation9], 64
    $region73: #{tpu_custom_call.1} parent=1 // pred_fallthru
      _
    // Predicated region
    $region74: #{tpu_custom_call.1} parent=1 // pred_check
      _
    $region75: #{tpu_custom_call.1} parent=1 // pred_check_branch
      %126 = sbr.rel (0) target = $region77
    $region76: #{tpu_custom_call.1} parent=1 // pred_region
      %128 = dma.done [#allocation9], 1024
    $region77: #{tpu_custom_call.1} parent=1 // pred_fallthru
      _
    %v130 = vld [vmem:[%s0] sm:$0x1]
    %v131 = vld [vmem:[%s1] sm:$0xf]
    %v132 = vld [vmem:[%s1 + $0x4] sm:$0xf]
    %v133 = vld [vmem:[%s1 + $0x8] sm:$0xf]
    %v134 = vld [vmem:[%s1 + $0xc] sm:$0xf]
    %v135 = vld [vmem:[%s1 + $0x10] sm:$0xf]
    %v136 = vld [vmem:[%s1 + $0x14] sm:$0xf]
    %v137 = vld [vmem:[%s1 + $0x18] sm:$0xf]
    %v138 = vld [vmem:[%s1 + $0x1c] sm:$0xf]
    %v139 = vld [vmem:[#allocation2] sm:$0x1]
    %v141 = vperm.slane %v139, 0
    %v151 = vunpack.c.l.b16 %v131
    %v152 = vunpack.c.l.b16 %v132
    %v153 = vunpack.c.l.b16 %v133
    %v154 = vunpack.c.l.b16 %v134
    %v155 = vunpack.c.l.b16 %v135
    %v156 = vunpack.c.l.b16 %v136
    %v157 = vunpack.c.l.b16 %v137
    %v158 = vunpack.c.l.b16 %v138
    %v159 = vpack.c.b16 %v152, %v151
    %v160 = vpack.c.b16 %v154, %v153
    %v161 = vpack.c.b16 %v156, %v155
    %v162 = vpack.c.b16 %v158, %v157
    %vm167 = vcmask 523264
    %v169 = vsel %vm167, %v130, 0
    %171 = vmatpush.bf16.msra.mxu0 0
    %172 = vmatpush.bf16.msra.mxu0 0
    %173 = vmatpush.bf16.msra.mxu0 0
    %174 = vmatpush.bf16.msra.mxu0 0
    %175 = vmatpush.bf16.msra.mxu0 %v162
    %176 = vmatpush.bf16.msra.mxu0 %v161
    %177 = vmatpush.bf16.msra.mxu0 %v160
    %178 = vmatpush.bf16.msra.mxu0 %v159
    %179 = vmatmul.bf16.gmra.mxu0 %v169
    %v180 = vpop.f32.mrf.mxu0
    %v181 = vadd.f32 %v141, %v180
    %v182 = vpop.f32.mrf.mxu0
    %183 = vdwg.mxu0
    %v184 = vmax.f32 %v181, 0.0
    %v185 = vpack.c.bf16 %v184, %v184
    %v186 = vld [vmem:[#allocation5] sm:$0xf]
    %v187 = vld [vmem:[#allocation5 + $0x4] sm:$0xf]
    %v188 = vld [vmem:[#allocation5 + $0x8] sm:$0xf]
    %v189 = vld [vmem:[#allocation5 + $0xc] sm:$0xf]
    %v190 = vld [vmem:[#allocation5 + $0x10] sm:$0xf]
    %v191 = vld [vmem:[#allocation5 + $0x14] sm:$0xf]
    %v192 = vld [vmem:[#allocation5 + $0x18] sm:$0xf]
    %v193 = vld [vmem:[#allocation5 + $0x1c] sm:$0xf]
    %v194 = vld [vmem:[#allocation7] sm:$0x1]
    %v196 = vperm.slane %v194, 0
    %v206 = vunpack.c.l.b16 %v186
    %v207 = vunpack.c.l.b16 %v187
    %v208 = vunpack.c.l.b16 %v188
    %v209 = vunpack.c.l.b16 %v189
    %v210 = vunpack.c.l.b16 %v190
    %v211 = vunpack.c.l.b16 %v191
    %v212 = vunpack.c.l.b16 %v192
    %v213 = vunpack.c.l.b16 %v193
    %v214 = vpack.c.b16 %v207, %v206
    %v215 = vpack.c.b16 %v209, %v208
    %v216 = vpack.c.b16 %v211, %v210
    %v217 = vpack.c.b16 %v213, %v212
    %v223 = vsel %vm167, %v185, 0
    %225 = vmatpush.bf16.msra.mxu0 0
    %226 = vmatpush.bf16.msra.mxu0 0
    %227 = vmatpush.bf16.msra.mxu0 0
    %228 = vmatpush.bf16.msra.mxu0 0
    %229 = vmatpush.bf16.msra.mxu0 %v217
    %230 = vmatpush.bf16.msra.mxu0 %v216
    %231 = vmatpush.bf16.msra.mxu0 %v215
    %232 = vmatpush.bf16.msra.mxu0 %v214
    %233 = vmatmul.bf16.gmra.mxu0 %v223
    %v234 = vpop.f32.mrf.mxu0
    %v235 = vadd.f32 %v196, %v234
    %v236 = vpop.f32.mrf.mxu0
    %237 = vdwg.mxu0
    %v238 = vmax.f32 %v235, 0.0
    %v239 = vpack.c.bf16 %v238, %v238
    %v240 = vld [vmem:[%s5] sm:$0xf]
    %v241 = vld [vmem:[%s5 + $0x4] sm:$0xf]
    %v242 = vld [vmem:[%s5 + $0x8] sm:$0xf]
    %v243 = vld [vmem:[%s5 + $0xc] sm:$0xf]
    %v244 = vld [vmem:[%s5 + $0x10] sm:$0xf]
    %v245 = vld [vmem:[%s5 + $0x14] sm:$0xf]
    %v246 = vld [vmem:[%s5 + $0x18] sm:$0xf]
    %v247 = vld [vmem:[%s5 + $0x1c] sm:$0xf]
    %v248 = vld [vmem:[#allocation8] sm:$0x1]
    %v250 = vperm.slane %v248, 0
    %v260 = vunpack.c.l.b16 %v240
    %v261 = vunpack.c.l.b16 %v241
    %v262 = vunpack.c.l.b16 %v242
    %v263 = vunpack.c.l.b16 %v243
    %v264 = vunpack.c.l.b16 %v244
    %v265 = vunpack.c.l.b16 %v245
    %v266 = vunpack.c.l.b16 %v246
    %v267 = vunpack.c.l.b16 %v247
    %v268 = vpack.c.b16 %v261, %v260
    %v269 = vpack.c.b16 %v263, %v262
    %v270 = vpack.c.b16 %v265, %v264
    %v271 = vpack.c.b16 %v267, %v266
    %v277 = vsel %vm167, %v239, 0
    %279 = vmatpush.bf16.msra.mxu0 0
    %280 = vmatpush.bf16.msra.mxu0 0
    %281 = vmatpush.bf16.msra.mxu0 0
    %282 = vmatpush.bf16.msra.mxu0 0
    %283 = vmatpush.bf16.msra.mxu0 %v271
    %284 = vmatpush.bf16.msra.mxu0 %v270
    %285 = vmatpush.bf16.msra.mxu0 %v269
    %286 = vmatpush.bf16.msra.mxu0 %v268
    %287 = vmatmul.bf16.gmra.mxu0 %v277
    %v288 = vpop.f32.mrf.mxu0
    %v289 = vadd.f32 %v250, %v288
    %v290 = vpop.f32.mrf.mxu0
    %291 = vdwg.mxu0
    %vm292 = vcmask 58368
    %293 = vst.msk [vmem:[#allocation11] sm:$0x3] %vm292, %v289
    %s294 = scalar_lea.vmem %s0, 1
    %v295 = vld [vmem:[%s294] sm:$0x1]
    %s296 = scalar_lea.vmem %s1, 32
    %v297 = vld [vmem:[%s296] sm:$0xf]
    %v298 = vld [vmem:[%s296 + $0x4] sm:$0xf]
    %v299 = vld [vmem:[%s296 + $0x8] sm:$0xf]
    %v300 = vld [vmem:[%s296 + $0xc] sm:$0xf]
    %v301 = vld [vmem:[%s296 + $0x10] sm:$0xf]
    %v302 = vld [vmem:[%s296 + $0x14] sm:$0xf]
    %v303 = vld [vmem:[%s296 + $0x18] sm:$0xf]
    %v304 = vld [vmem:[%s296 + $0x1c] sm:$0xf]
    %s305 = scalar_lea.vmem [#allocation2], 1
    %v306 = vld [vmem:[%s305] sm:$0x1]
    %v308 = vperm.slane %v306, 0
    %v318 = vunpack.c.l.b16 %v297
    %v319 = vunpack.c.l.b16 %v298
    %v320 = vunpack.c.l.b16 %v299
    %v321 = vunpack.c.l.b16 %v300
    %v322 = vunpack.c.l.b16 %v301
    %v323 = vunpack.c.l.b16 %v302
    %v324 = vunpack.c.l.b16 %v303
    %v325 = vunpack.c.l.b16 %v304
    %v326 = vpack.c.b16 %v319, %v318
    %v327 = vpack.c.b16 %v321, %v320
    %v328 = vpack.c.b16 %v323, %v322
    %v329 = vpack.c.b16 %v325, %v324
    %v335 = vsel %vm167, %v295, 0
    %337 = vmatpush.bf16.msra.mxu0 0
    %338 = vmatpush.bf16.msra.mxu0 0
    %339 = vmatpush.bf16.msra.mxu0 0
    %340 = vmatpush.bf16.msra.mxu0 0
    %341 = vmatpush.bf16.msra.mxu0 %v329
    %342 = vmatpush.bf16.msra.mxu0 %v328
    %343 = vmatpush.bf16.msra.mxu0 %v327
    %344 = vmatpush.bf16.msra.mxu0 %v326
    %345 = vmatmul.bf16.gmra.mxu0 %v335
    %v346 = vpop.f32.mrf.mxu0
    %v347 = vadd.f32 %v308, %v346
    %v348 = vpop.f32.mrf.mxu0
    %349 = vdwg.mxu0
    %v350 = vmax.f32 %v347, 0.0
    %v351 = vpack.c.bf16 %v350, %v350
    %s352 = scalar_lea.vmem [#allocation5], 32
    %v353 = vld [vmem:[%s352] sm:$0xf]
    %v354 = vld [vmem:[%s352 + $0x4] sm:$0xf]
    %v355 = vld [vmem:[%s352 + $0x8] sm:$0xf]
    %v356 = vld [vmem:[%s352 + $0xc] sm:$0xf]
    %v357 = vld [vmem:[%s352 + $0x10] sm:$0xf]
    %v358 = vld [vmem:[%s352 + $0x14] sm:$0xf]
    %v359 = vld [vmem:[%s352 + $0x18] sm:$0xf]
    %v360 = vld [vmem:[%s352 + $0x1c] sm:$0xf]
    %s361 = scalar_lea.vmem [#allocation7], 1
    %v362 = vld [vmem:[%s361] sm:$0x1]
    %v364 = vperm.slane %v362, 0
    %v374 = vunpack.c.l.b16 %v353
    %v375 = vunpack.c.l.b16 %v354
    %v376 = vunpack.c.l.b16 %v355
    %v377 = vunpack.c.l.b16 %v356
    %v378 = vunpack.c.l.b16 %v357
    %v379 = vunpack.c.l.b16 %v358
    %v380 = vunpack.c.l.b16 %v359
    %v381 = vunpack.c.l.b16 %v360
    %v382 = vpack.c.b16 %v375, %v374
    %v383 = vpack.c.b16 %v377, %v376
    %v384 = vpack.c.b16 %v379, %v378
    %v385 = vpack.c.b16 %v381, %v380
    %v391 = vsel %vm167, %v351, 0
    %393 = vmatpush.bf16.msra.mxu0 0
    %394 = vmatpush.bf16.msra.mxu0 0
    %395 = vmatpush.bf16.msra.mxu0 0
    %396 = vmatpush.bf16.msra.mxu0 0
    %397 = vmatpush.bf16.msra.mxu0 %v385
    %398 = vmatpush.bf16.msra.mxu0 %v384
    %399 = vmatpush.bf16.msra.mxu0 %v383
    %400 = vmatpush.bf16.msra.mxu0 %v382
    %401 = vmatmul.bf16.gmra.mxu0 %v391
    %v402 = vpop.f32.mrf.mxu0
    %v403 = vadd.f32 %v364, %v402
    %v404 = vpop.f32.mrf.mxu0
    %405 = vdwg.mxu0
    %v406 = vmax.f32 %v403, 0.0
    %v407 = vpack.c.bf16 %v406, %v406
    %s408 = scalar_lea.vmem %s5, 32
    %v409 = vld [vmem:[%s408] sm:$0xf]
    %v410 = vld [vmem:[%s408 + $0x4] sm:$0xf]
    %v411 = vld [vmem:[%s408 + $0x8] sm:$0xf]
    %v412 = vld [vmem:[%s408 + $0xc] sm:$0xf]
    %v413 = vld [vmem:[%s408 + $0x10] sm:$0xf]
    %v414 = vld [vmem:[%s408 + $0x14] sm:$0xf]
    %v415 = vld [vmem:[%s408 + $0x18] sm:$0xf]
    %v416 = vld [vmem:[%s408 + $0x1c] sm:$0xf]
    %s417 = scalar_lea.vmem [#allocation8], 1
    %v418 = vld [vmem:[%s417] sm:$0x1]
    %v420 = vperm.slane %v418, 0
    %v430 = vunpack.c.l.b16 %v409
    %v431 = vunpack.c.l.b16 %v410
    %v432 = vunpack.c.l.b16 %v411
    %v433 = vunpack.c.l.b16 %v412
    %v434 = vunpack.c.l.b16 %v413
    %v435 = vunpack.c.l.b16 %v414
    %v436 = vunpack.c.l.b16 %v415
    %v437 = vunpack.c.l.b16 %v416
    %v438 = vpack.c.b16 %v431, %v430
    %v439 = vpack.c.b16 %v433, %v432
    %v440 = vpack.c.b16 %v435, %v434
    %v441 = vpack.c.b16 %v437, %v436
    %v447 = vsel %vm167, %v407, 0
    %449 = vmatpush.bf16.msra.mxu0 0
    %450 = vmatpush.bf16.msra.mxu0 0
    %451 = vmatpush.bf16.msra.mxu0 0
    %452 = vmatpush.bf16.msra.mxu0 0
    %453 = vmatpush.bf16.msra.mxu0 %v441
    %454 = vmatpush.bf16.msra.mxu0 %v440
    %455 = vmatpush.bf16.msra.mxu0 %v439
    %456 = vmatpush.bf16.msra.mxu0 %v438
    %457 = vmatmul.bf16.gmra.mxu0 %v447
    %v458 = vpop.f32.mrf.mxu0
    %v459 = vadd.f32 %v420, %v458
    %v460 = vpop.f32.mrf.mxu0
    %461 = vdwg.mxu0
    %s462 = scalar_lea.vmem [#allocation11], 2
    %463 = vst.msk [vmem:[%s462] sm:$0x3] %vm292, %v459
    %s464 = scalar_lea.vmem %s0, 2
    %v465 = vld [vmem:[%s464] sm:$0x1]
    %s466 = scalar_lea.vmem %s1, 64
    %v467 = vld [vmem:[%s466] sm:$0xf]
    %v468 = vld [vmem:[%s466 + $0x4] sm:$0xf]
    %v469 = vld [vmem:[%s466 + $0x8] sm:$0xf]
    %v470 = vld [vmem:[%s466 + $0xc] sm:$0xf]
    %v471 = vld [vmem:[%s466 + $0x10] sm:$0xf]
    %v472 = vld [vmem:[%s466 + $0x14] sm:$0xf]
    %v473 = vld [vmem:[%s466 + $0x18] sm:$0xf]
    %v474 = vld [vmem:[%s466 + $0x1c] sm:$0xf]
    %s475 = scalar_lea.vmem [#allocation2], 2
    %v476 = vld [vmem:[%s475] sm:$0x1]
    %v478 = vperm.slane %v476, 0
    %v488 = vunpack.c.l.b16 %v467
    %v489 = vunpack.c.l.b16 %v468
    %v490 = vunpack.c.l.b16 %v469
    %v491 = vunpack.c.l.b16 %v470
    %v492 = vunpack.c.l.b16 %v471
    %v493 = vunpack.c.l.b16 %v472
    %v494 = vunpack.c.l.b16 %v473
    %v495 = vunpack.c.l.b16 %v474
    %v496 = vpack.c.b16 %v489, %v488
    %v497 = vpack.c.b16 %v491, %v490
    %v498 = vpack.c.b16 %v493, %v492
    %v499 = vpack.c.b16 %v495, %v494
    %v505 = vsel %vm167, %v465, 0
    %507 = vmatpush.bf16.msra.mxu0 0
    %508 = vmatpush.bf16.msra.mxu0 0
    %509 = vmatpush.bf16.msra.mxu0 0
    %510 = vmatpush.bf16.msra.mxu0 0
    %511 = vmatpush.bf16.msra.mxu0 %v499
    %512 = vmatpush.bf16.msra.mxu0 %v498
    %513 = vmatpush.bf16.msra.mxu0 %v497
    %514 = vmatpush.bf16.msra.mxu0 %v496
    %515 = vmatmul.bf16.gmra.mxu0 %v505
    %v516 = vpop.f32.mrf.mxu0
    %v517 = vadd.f32 %v478, %v516
    %v518 = vpop.f32.mrf.mxu0
    %519 = vdwg.mxu0
    %v520 = vmax.f32 %v517, 0.0
    %v521 = vpack.c.bf16 %v520, %v520
    %s522 = scalar_lea.vmem [#allocation5], 64
    %v523 = vld [vmem:[%s522] sm:$0xf]
    %v524 = vld [vmem:[%s522 + $0x4] sm:$0xf]
    %v525 = vld [vmem:[%s522 + $0x8] sm:$0xf]
    %v526 = vld [vmem:[%s522 + $0xc] sm:$0xf]
    %v527 = vld [vmem:[%s522 + $0x10] sm:$0xf]
    %v528 = vld [vmem:[%s522 + $0x14] sm:$0xf]
    %v529 = vld [vmem:[%s522 + $0x18] sm:$0xf]
    %v530 = vld [vmem:[%s522 + $0x1c] sm:$0xf]
    %s531 = scalar_lea.vmem [#allocation7], 2
    %v532 = vld [vmem:[%s531] sm:$0x1]
    %v534 = vperm.slane %v532, 0
    %v544 = vunpack.c.l.b16 %v523
    %v545 = vunpack.c.l.b16 %v524
    %v546 = vunpack.c.l.b16 %v525
    %v547 = vunpack.c.l.b16 %v526
    %v548 = vunpack.c.l.b16 %v527
    %v549 = vunpack.c.l.b16 %v528
    %v550 = vunpack.c.l.b16 %v529
    %v551 = vunpack.c.l.b16 %v530
    %v552 = vpack.c.b16 %v545, %v544
    %v553 = vpack.c.b16 %v547, %v546
    %v554 = vpack.c.b16 %v549, %v548
    %v555 = vpack.c.b16 %v551, %v550
    %v561 = vsel %vm167, %v521, 0
    %563 = vmatpush.bf16.msra.mxu0 0
    %564 = vmatpush.bf16.msra.mxu0 0
    %565 = vmatpush.bf16.msra.mxu0 0
    %566 = vmatpush.bf16.msra.mxu0 0
    %567 = vmatpush.bf16.msra.mxu0 %v555
    %568 = vmatpush.bf16.msra.mxu0 %v554
    %569 = vmatpush.bf16.msra.mxu0 %v553
    %570 = vmatpush.bf16.msra.mxu0 %v552
    %571 = vmatmul.bf16.gmra.mxu0 %v561
    %v572 = vpop.f32.mrf.mxu0
    %v573 = vadd.f32 %v534, %v572
    %v574 = vpop.f32.mrf.mxu0
    %575 = vdwg.mxu0
    %v576 = vmax.f32 %v573, 0.0
    %v577 = vpack.c.bf16 %v576, %v576
    %s578 = scalar_lea.vmem %s5, 64
    %v579 = vld [vmem:[%s578] sm:$0xf]
    %v580 = vld [vmem:[%s578 + $0x4] sm:$0xf]
    %v581 = vld [vmem:[%s578 + $0x8] sm:$0xf]
    %v582 = vld [vmem:[%s578 + $0xc] sm:$0xf]
    %v583 = vld [vmem:[%s578 + $0x10] sm:$0xf]
    %v584 = vld [vmem:[%s578 + $0x14] sm:$0xf]
    %v585 = vld [vmem:[%s578 + $0x18] sm:$0xf]
    %v586 = vld [vmem:[%s578 + $0x1c] sm:$0xf]
    %s587 = scalar_lea.vmem [#allocation8], 2
    %v588 = vld [vmem:[%s587] sm:$0x1]
    %v590 = vperm.slane %v588, 0
    %v600 = vunpack.c.l.b16 %v579
    %v601 = vunpack.c.l.b16 %v580
    %v602 = vunpack.c.l.b16 %v581
    %v603 = vunpack.c.l.b16 %v582
    %v604 = vunpack.c.l.b16 %v583
    %v605 = vunpack.c.l.b16 %v584
    %v606 = vunpack.c.l.b16 %v585
    %v607 = vunpack.c.l.b16 %v586
    %v608 = vpack.c.b16 %v601, %v600
    %v609 = vpack.c.b16 %v603, %v602
    %v610 = vpack.c.b16 %v605, %v604
    %v611 = vpack.c.b16 %v607, %v606
    %v617 = vsel %vm167, %v577, 0
    %619 = vmatpush.bf16.msra.mxu0 0
    %620 = vmatpush.bf16.msra.mxu0 0
    %621 = vmatpush.bf16.msra.mxu0 0
    %622 = vmatpush.bf16.msra.mxu0 0
    %623 = vmatpush.bf16.msra.mxu0 %v611
    %624 = vmatpush.bf16.msra.mxu0 %v610
    %625 = vmatpush.bf16.msra.mxu0 %v609
    %626 = vmatpush.bf16.msra.mxu0 %v608
    %627 = vmatmul.bf16.gmra.mxu0 %v617
    %v628 = vpop.f32.mrf.mxu0
    %v629 = vadd.f32 %v590, %v628
    %v630 = vpop.f32.mrf.mxu0
    %631 = vdwg.mxu0
    %s632 = scalar_lea.vmem [#allocation11], 4
    %633 = vst.msk [vmem:[%s632] sm:$0x3] %vm292, %v629
    %s634 = scalar_lea.vmem %s0, 3
    %v635 = vld [vmem:[%s634] sm:$0x1]
    %s636 = scalar_lea.vmem %s1, 96
    %v637 = vld [vmem:[%s636] sm:$0xf]
    %v638 = vld [vmem:[%s636 + $0x4] sm:$0xf]
    %v639 = vld [vmem:[%s636 + $0x8] sm:$0xf]
    %v640 = vld [vmem:[%s636 + $0xc] sm:$0xf]
    %v641 = vld [vmem:[%s636 + $0x10] sm:$0xf]
    %v642 = vld [vmem:[%s636 + $0x14] sm:$0xf]
    %v643 = vld [vmem:[%s636 + $0x18] sm:$0xf]
    %v644 = vld [vmem:[%s636 + $0x1c] sm:$0xf]
    %s645 = scalar_lea.vmem [#allocation2], 3
    %v646 = vld [vmem:[%s645] sm:$0x1]
    %v648 = vperm.slane %v646, 0
    %v658 = vunpack.c.l.b16 %v637
    %v659 = vunpack.c.l.b16 %v638
    %v660 = vunpack.c.l.b16 %v639
    %v661 = vunpack.c.l.b16 %v640
    %v662 = vunpack.c.l.b16 %v641
    %v663 = vunpack.c.l.b16 %v642
    %v664 = vunpack.c.l.b16 %v643
    %v665 = vunpack.c.l.b16 %v644
    %v666 = vpack.c.b16 %v659, %v658
    %v667 = vpack.c.b16 %v661, %v660
    %v668 = vpack.c.b16 %v663, %v662
    %v669 = vpack.c.b16 %v665, %v664
    %v675 = vsel %vm167, %v635, 0
    %677 = vmatpush.bf16.msra.mxu0 0
    %678 = vmatpush.bf16.msra.mxu0 0
    %679 = vmatpush.bf16.msra.mxu0 0
    %680 = vmatpush.bf16.msra.mxu0 0
    %681 = vmatpush.bf16.msra.mxu0 %v669
    %682 = vmatpush.bf16.msra.mxu0 %v668
    %683 = vmatpush.bf16.msra.mxu0 %v667
    %684 = vmatpush.bf16.msra.mxu0 %v666
    %685 = vmatmul.bf16.gmra.mxu0 %v675
    %v686 = vpop.f32.mrf.mxu0
    %v687 = vadd.f32 %v648, %v686
    %v688 = vpop.f32.mrf.mxu0
    %689 = vdwg.mxu0
    %v690 = vmax.f32 %v687, 0.0
    %v691 = vpack.c.bf16 %v690, %v690
    %s692 = scalar_lea.vmem [#allocation5], 96
    %v693 = vld [vmem:[%s692] sm:$0xf]
    %v694 = vld [vmem:[%s692 + $0x4] sm:$0xf]
    %v695 = vld [vmem:[%s692 + $0x8] sm:$0xf]
    %v696 = vld [vmem:[%s692 + $0xc] sm:$0xf]
    %v697 = vld [vmem:[%s692 + $0x10] sm:$0xf]
    %v698 = vld [vmem:[%s692 + $0x14] sm:$0xf]
    %v699 = vld [vmem:[%s692 + $0x18] sm:$0xf]
    %v700 = vld [vmem:[%s692 + $0x1c] sm:$0xf]
    %s701 = scalar_lea.vmem [#allocation7], 3
    %v702 = vld [vmem:[%s701] sm:$0x1]
    %v704 = vperm.slane %v702, 0
    %v714 = vunpack.c.l.b16 %v693
    %v715 = vunpack.c.l.b16 %v694
    %v716 = vunpack.c.l.b16 %v695
    %v717 = vunpack.c.l.b16 %v696
    %v718 = vunpack.c.l.b16 %v697
    %v719 = vunpack.c.l.b16 %v698
    %v720 = vunpack.c.l.b16 %v699
    %v721 = vunpack.c.l.b16 %v700
    %v722 = vpack.c.b16 %v715, %v714
    %v723 = vpack.c.b16 %v717, %v716
    %v724 = vpack.c.b16 %v719, %v718
    %v725 = vpack.c.b16 %v721, %v720
    %v731 = vsel %vm167, %v691, 0
    %733 = vmatpush.bf16.msra.mxu0 0
    %734 = vmatpush.bf16.msra.mxu0 0
    %735 = vmatpush.bf16.msra.mxu0 0
    %736 = vmatpush.bf16.msra.mxu0 0
    %737 = vmatpush.bf16.msra.mxu0 %v725
    %738 = vmatpush.bf16.msra.mxu0 %v724
    %739 = vmatpush.bf16.msra.mxu0 %v723
    %740 = vmatpush.bf16.msra.mxu0 %v722
    %741 = vmatmul.bf16.gmra.mxu0 %v731
    %v742 = vpop.f32.mrf.mxu0
    %v743 = vadd.f32 %v704, %v742
    %v744 = vpop.f32.mrf.mxu0
    %745 = vdwg.mxu0
    %v746 = vmax.f32 %v743, 0.0
    %v747 = vpack.c.bf16 %v746, %v746
    %s748 = scalar_lea.vmem %s5, 96
    %v749 = vld [vmem:[%s748] sm:$0xf]
    %v750 = vld [vmem:[%s748 + $0x4] sm:$0xf]
    %v751 = vld [vmem:[%s748 + $0x8] sm:$0xf]
    %v752 = vld [vmem:[%s748 + $0xc] sm:$0xf]
    %v753 = vld [vmem:[%s748 + $0x10] sm:$0xf]
    %v754 = vld [vmem:[%s748 + $0x14] sm:$0xf]
    %v755 = vld [vmem:[%s748 + $0x18] sm:$0xf]
    %v756 = vld [vmem:[%s748 + $0x1c] sm:$0xf]
    %s757 = scalar_lea.vmem [#allocation8], 3
    %v758 = vld [vmem:[%s757] sm:$0x1]
    %v760 = vperm.slane %v758, 0
    %v770 = vunpack.c.l.b16 %v749
    %v771 = vunpack.c.l.b16 %v750
    %v772 = vunpack.c.l.b16 %v751
    %v773 = vunpack.c.l.b16 %v752
    %v774 = vunpack.c.l.b16 %v753
    %v775 = vunpack.c.l.b16 %v754
    %v776 = vunpack.c.l.b16 %v755
    %v777 = vunpack.c.l.b16 %v756
    %v778 = vpack.c.b16 %v771, %v770
    %v779 = vpack.c.b16 %v773, %v772
    %v780 = vpack.c.b16 %v775, %v774
    %v781 = vpack.c.b16 %v777, %v776
    %v787 = vsel %vm167, %v747, 0
    %789 = vmatpush.bf16.msra.mxu0 0
    %790 = vmatpush.bf16.msra.mxu0 0
    %791 = vmatpush.bf16.msra.mxu0 0
    %792 = vmatpush.bf16.msra.mxu0 0
    %793 = vmatpush.bf16.msra.mxu0 %v781
    %794 = vmatpush.bf16.msra.mxu0 %v780
    %795 = vmatpush.bf16.msra.mxu0 %v779
    %796 = vmatpush.bf16.msra.mxu0 %v778
    %797 = vmatmul.bf16.gmra.mxu0 %v787
    %v798 = vpop.f32.mrf.mxu0
    %v799 = vadd.f32 %v760, %v798
    %v800 = vpop.f32.mrf.mxu0
    %801 = vdwg.mxu0
    %s802 = scalar_lea.vmem [#allocation11], 6
    %803 = vst.msk [vmem:[%s802] sm:$0x3] %vm292, %v799
    %v804 = vld [vmem:[%s7] sm:$0x3]
    %v805 = vld [vmem:[%s8] sm:$0xff]
    %v806 = vld [vmem:[%s8 + $0x8] sm:$0xff]
    %v807 = vld [vmem:[%s8 + $0x10] sm:$0xff]
    %v808 = vld [vmem:[%s8 + $0x18] sm:$0xff]
    %v809 = vld [vmem:[%s8 + $0x20] sm:$0xff]
    %v810 = vld [vmem:[%s8 + $0x28] sm:$0xff]
    %v811 = vld [vmem:[%s8 + $0x30] sm:$0xff]
    %v812 = vld [vmem:[%s8 + $0x38] sm:$0xff]
    %v813 = vld [vmem:[%s9] sm:$0x1]
    %v815 = vperm.slane %v813, 0
    %v818 = vsel %vm167, %v804, 0
    %820 = vmatpush.msra.mxu0 0.0
    %821 = vmatpush.msra.mxu0 0.0
    %822 = vmatpush.msra.mxu0 0.0
    %823 = vmatpush.msra.mxu0 0.0
    %824 = vmatpush.msra.mxu0 0.0
    %825 = vmatpush.msra.mxu0 0.0
    %826 = vmatpush.msra.mxu0 0.0
    %827 = vmatpush.msra.mxu0 0.0
    %828 = vmatpush.msra.mxu0 %v812
    %829 = vmatpush.msra.mxu0 %v811
    %830 = vmatpush.msra.mxu0 %v810
    %831 = vmatpush.msra.mxu0 %v809
    %832 = vmatpush.msra.mxu0 %v808
    %833 = vmatpush.msra.mxu0 %v807
    %834 = vmatpush.msra.mxu0 %v806
    %835 = vmatpush.msra.mxu0 %v805
    %836 = vmatmul.f32.gmra.mxu0 %v818
    %v837 = vpop.f32.mrf.mxu0
    %v838 = vadd.f32 %v815, %v837
    %839 = vdwg.mxu0
    %v840 = vmax.f32 %v838, 0.0
    %v841 = vld [vmem:[#allocation10] sm:$0xff]
    %v842 = vld [vmem:[#allocation10 + $0x8] sm:$0xff]
    %v843 = vld [vmem:[#allocation10 + $0x10] sm:$0xff]
    %v844 = vld [vmem:[#allocation10 + $0x18] sm:$0xff]
    %v845 = vld [vmem:[#allocation10 + $0x20] sm:$0xff]
    %v846 = vld [vmem:[#allocation10 + $0x28] sm:$0xff]
    %v847 = vld [vmem:[#allocation10 + $0x30] sm:$0xff]
    %v848 = vld [vmem:[#allocation10 + $0x38] sm:$0xff]
    %v849 = vld [vmem:[%s11] sm:$0x1]
    %v851 = vperm.slane %v849, 0
    %v854 = vsel %vm167, %v840, 0
    %856 = vmatpush.msra.mxu0 0.0
    %857 = vmatpush.msra.mxu0 0.0
    %858 = vmatpush.msra.mxu0 0.0
    %859 = vmatpush.msra.mxu0 0.0
    %860 = vmatpush.msra.mxu0 0.0
    %861 = vmatpush.msra.mxu0 0.0
    %862 = vmatpush.msra.mxu0 0.0
    %863 = vmatpush.msra.mxu0 0.0
    %864 = vmatpush.msra.mxu0 %v848
    %865 = vmatpush.msra.mxu0 %v847
    %866 = vmatpush.msra.mxu0 %v846
    %867 = vmatpush.msra.mxu0 %v845
    %868 = vmatpush.msra.mxu0 %v844
    %869 = vmatpush.msra.mxu0 %v843
    %870 = vmatpush.msra.mxu0 %v842
    %871 = vmatpush.msra.mxu0 %v841
    %872 = vmatmul.f32.gmra.mxu0 %v854
    %v873 = vpop.f32.mrf.mxu0
    %v874 = vadd.f32 %v851, %v873
    %875 = vdwg.mxu0
    %v876 = vmax.f32 %v874, 0.0
    %v877 = vld [vmem:[%s12] sm:$0xff]
    %v878 = vld [vmem:[%s12 + $0x8] sm:$0xff]
    %v879 = vld [vmem:[%s12 + $0x10] sm:$0xff]
    %v880 = vld [vmem:[%s12 + $0x18] sm:$0xff]
    %v881 = vld [vmem:[%s12 + $0x20] sm:$0xff]
    %v882 = vld [vmem:[%s12 + $0x28] sm:$0xff]
    %v883 = vld [vmem:[%s12 + $0x30] sm:$0xff]
    %v884 = vld [vmem:[%s12 + $0x38] sm:$0xff]
    %v885 = vld [vmem:[%s13] sm:$0x1]
    %v887 = vperm.slane %v885, 0
    %v890 = vsel %vm167, %v876, 0
    %892 = vmatpush.msra.mxu0 0.0
    %893 = vmatpush.msra.mxu0 0.0
    %894 = vmatpush.msra.mxu0 0.0
    %895 = vmatpush.msra.mxu0 0.0
    %896 = vmatpush.msra.mxu0 0.0
    %897 = vmatpush.msra.mxu0 0.0
    %898 = vmatpush.msra.mxu0 0.0
    %899 = vmatpush.msra.mxu0 0.0
    %900 = vmatpush.msra.mxu0 %v884
    %901 = vmatpush.msra.mxu0 %v883
    %902 = vmatpush.msra.mxu0 %v882
    %903 = vmatpush.msra.mxu0 %v881
    %904 = vmatpush.msra.mxu0 %v880
    %905 = vmatpush.msra.mxu0 %v879
    %906 = vmatpush.msra.mxu0 %v878
    %907 = vmatpush.msra.mxu0 %v877
    %908 = vmatmul.f32.gmra.mxu0 %v890
    %v909 = vpop.f32.mrf.mxu0
    %v910 = vadd.f32 %v887, %v909
    %911 = vdwg.mxu0
    %vm912 = vcmask 25600
    %913 = vst.msk [vmem:[#allocation12] sm:$0x3] %vm912, %v910
    // Predicated region
    $region78: #{tpu_custom_call.1} parent=1 // pred_check
      _
    $region79: #{tpu_custom_call.1} parent=1 // pred_check_branch
      %915 = sbr.rel (0) target = $region81
    $region80: #{tpu_custom_call.1} parent=1 // pred_region
      %917 = vsyncadd [#allocation4], 0
      %s918 = sshll.u32 [#allocation11], 4
      %s919 = int_to_ptr.vmem [resolvable:$true] %s918
      %s920 = sshll.u32 %s14, 4
      %s921 = int_to_ptr.hbm [resolvable:$true] %s920
      %926 = dma.vmem_to_hbm [thread:$0]  %s919, 128, %s921, [#allocation4], 32, 32, 2
    $region81: #{tpu_custom_call.1} parent=1 // pred_fallthru
      _
    // Predicated region
    $region82: #{tpu_custom_call.1} parent=1 // pred_check
      _
    $region83: #{tpu_custom_call.1} parent=1 // pred_check_branch
      %928 = sbr.rel (0) target = $region85
    $region84: #{tpu_custom_call.1} parent=1 // pred_region
      %930 = vsyncadd [#allocation13], 0
      %s932 = sshll.u32 [#allocation12], 4
      %s933 = int_to_ptr.vmem [resolvable:$true] %s932
      %s934 = sshll.u32 %s15, 4
      %s935 = int_to_ptr.hbm [resolvable:$true] %s934
      %937 = dma.vmem_to_hbm [thread:$0]  %s933, 32, %s935, [#allocation13]
    $region85: #{tpu_custom_call.1} parent=1 // pred_fallthru
      _
    // Predicated region
    $region86: #{tpu_custom_call.1} parent=1 // pred_check
      _
    $region87: #{tpu_custom_call.1} parent=1 // pred_check_branch
      %939 = sbr.rel (0) target = $region89
    $region88: #{tpu_custom_call.1} parent=1 // pred_region
      %941 = dma.done [#allocation4], 128
    $region89: #{tpu_custom_call.1} parent=1 // pred_fallthru
      _
    // Predicated region
    $region90: #{tpu_custom_call.1} parent=1 // pred_check
      _
    $region91: #{tpu_custom_call.1} parent=1 // pred_check_branch
      %943 = sbr.rel (0) target = $region93
    $region92: #{tpu_custom_call.1} parent=1 // pred_region
      %945 = dma.done [#allocation13], 32
    $region93: #{tpu_custom_call.1} parent=1 // pred_fallthru
      _
    %946 = vsyncpa [#allocation3], 1
    %947 = vsyncpa [#allocation6], 1
    %948 = vsyncpa [#allocation9], 1
    %949 = vsyncpa [#allocation4], 1
    %950 = vsyncpa [#allocation13], 1

</llo_original>
